<compile_context>
chip_gen: v7x
topology: tpu7x:2x2x1
jax: 0.10.0
libtpu: 0.0.40
codegen_flags: <defaults>
</compile_context>

<pallas_src>
from functools import partial

import jax
import jax.numpy as jnp
from jax import lax
from jax.experimental import pallas as pl
from jax.experimental.pallas import tpu as pltpu


def _loopresnet_kernel(x_ref, w1_ref, b1_ref, w2_ref, b2_ref, w3_ref, b3_ref,
                       o_ref):
    # TODO(synk): dropout is identity here (eval mode); training-mode dropout
    # would need pltpu.prng_seed / prng_random_bits masking + 1/(1-p) scaling.

    # In-kernel cast of the activation tile (VPU, hidden under DMA/MXU) instead
    # of a wrapper-side astype that would cost an extra full HBM pass over x.
    x = x_ref[...].astype(w1_ref.dtype)

    # linear1 + ReLU : (TB, F) @ (F, 64) + (1, 64)   -- MXU, f32 accumulate.
    h1 = jnp.dot(x, w1_ref[...], preferred_element_type=jnp.float32)
    h1 = jnp.maximum(h1 + b1_ref[...], 0.0)

    # linear2 + ReLU : (TB, 64) @ (64, C) + (1, C)   -- MXU, f32 accumulate.
    h2 = jnp.dot(h1.astype(w2_ref.dtype), w2_ref[...],
                 preferred_element_type=jnp.float32)
    h2 = jnp.maximum(h2 + b2_ref[...], 0.0)

    # layer_out head (out_features = 1): contract the C columns of h2 against
    # the w3 row with the *batch* dim landing on lanes -> (1, TB) result, so
    # the store below is a lane-dense unmasked vst (instead of a (TB, 1) block
    # that needs a masked 1-lane partial store every step).
    out = lax.dot_general(w3_ref[...], h2,
                          dimension_numbers=(((1,), (1,)), ((), ())),
                          preferred_element_type=jnp.float32)
    # b3 is a scalar read from SMEM.
    o_ref[...] = (out + b3_ref[0]).astype(o_ref.dtype)


def _round_up(n, m):
    return -(-n // m) * m


def _choose_tile(B, feat, x_itemsize):
    """Batch-tile rows per grid step."""
    b_pad = _round_up(B, 8)
    if b_pad <= 512:
        return b_pad                              # tiny problem: single tile
    # Large batch: target ~4 MiB of x per tile (amortizes ~0.35 us/step grid
    # overhead against >= ~2 MiB of real HBM read).  Lanes pad to 128 in VMEM.
    row_bytes = _round_up(feat, 128) * x_itemsize
    tb = max(1024, min(8192, (4 << 20) // row_bytes))
    # Keep >= 2 grid steps so both v7x TensorCores get work.
    tb = min(tb, _round_up(pl.cdiv(b_pad, 2), 128))
    # Multiple of 128 so the lane-dense (1, tb) output block tiles cleanly.
    return max(128, _round_up(tb, 128))


def _vmem_limit_bytes(tb, feat, out_ch, x_itemsize, w_itemsize):
    """Explicit scoped-VMEM budget (sized for v7x's 64 MiB physical VMEM)."""
    lane = lambda n: _round_up(n, 128)
    sub = lambda n: _round_up(max(n, 1), 8)
    b = 2 * tb * lane(feat) * x_itemsize              # x tile, double-buffered
    b += sub(feat) * lane(64) * w_itemsize            # w1  (Buffered(1))
    b += sub(64) * lane(out_ch) * w_itemsize          # w2  (Buffered(1))
    b += 3 * 8 * lane(max(64, out_ch)) * 4            # b1, b2, w3 rows
    b += 2 * 8 * tb * 4                               # (1, tb) out, double-buf
    b += tb * lane(64) * 4 + tb * lane(out_ch) * 4    # h1 / h2 temporaries
    # 2x headroom for compiler scratch, clamped well under v7x's 64 MiB.
    return int(min(44 << 20, max(16 << 20, 2 * b)))


@partial(jax.jit, static_argnames=("compute_dtype",))
def loopresnet_forward(x, params, compute_dtype=jnp.float32):
    """x: (B, num_nodes, nfeat).  Returns (B, 1) float32."""
    B = x.shape[0]
    x_flat = x.reshape(B, -1)                     # torch.flatten(input, 1)
    feat = x_flat.shape[1]
    out_ch = params["w2"].shape[1]

    tb = _choose_tile(B, feat, x_flat.dtype.itemsize)
    nb = pl.cdiv(B, tb)                           # ragged last block: pad-read
    grid = (nb,)

    # MXU weight operands optionally bf16 (tiny arrays -> negligible cast);
    # x stays in its native dtype and is cast per-tile inside the kernel.
    w1 = params["w1"].astype(compute_dtype)
    w2 = params["w2"].astype(compute_dtype)
    b1, b2 = params["b1"], params["b2"]
    w3, b3 = params["w3"], params["b3"]           # (1, C) row, (1,) scalar

    # Weights / row-biases: constant index_map -> VMEM-resident across the
    # grid; Buffered(1) single-buffers them (no pointless double buffer).
    resident = lambda a: pl.BlockSpec(a.shape, lambda i: (0, 0),
                                      pipeline_mode=pl.Buffered(1))

    out = pl.pallas_call(
        _loopresnet_kernel,
        out_shape=jax.ShapeDtypeStruct((1, nb * tb), jnp.float32),
        grid=grid,
        in_specs=[
            pl.BlockSpec((tb, feat), lambda i: (i, 0)),      # x: batch-tiled
            resident(w1), resident(b1),
            resident(w2), resident(b2),
            resident(w3),
            pl.BlockSpec(memory_space=pltpu.SMEM),           # b3 scalar
        ],
        out_specs=pl.BlockSpec((1, tb), lambda i: (0, i)),   # lane-dense rows
        compiler_params=pltpu.CompilerParams(
            dimension_semantics=("parallel",),               # shard batch steps
            vmem_limit_bytes=_vmem_limit_bytes(
                tb, feat, out_ch, x_flat.dtype.itemsize,
                jnp.dtype(compute_dtype).itemsize),
        ),
    )(x_flat, w1, b1, w2, b2, w3, b3)

    # Garbage lanes from the ragged last block are discarded here (they never
    # contaminate valid rows: every output lane depends only on its own row).
    return out[0, :B].reshape(B, 1)


def init_params(key, num_nodes, nfeat, out_channels):
    """Deterministic init matching nn.Linear shapes (w1/w2 pre-transposed)."""
    in_feat = num_nodes * nfeat
    k1, k2, k3, k4, k5, k6 = jax.random.split(key, 6)

    def lin(kw, kb, fan_in, w_shape, b_shape):
        bound = 1.0 / jnp.sqrt(fan_in)
        w = jax.random.uniform(kw, w_shape, jnp.float32,
                               minval=-bound, maxval=bound)
        b = jax.random.uniform(kb, b_shape, jnp.float32,
                               minval=-bound, maxval=bound)
        return w, b

    w1, b1 = lin(k1, k2, in_feat, (in_feat, 64), (1, 64))          # linear1
    w2, b2 = lin(k3, k4, 64, (64, out_channels), (1, out_channels))  # linear2
    w3, b3 = lin(k5, k6, out_channels, (1, out_channels), (1,))    # layer_out
    return dict(w1=w1, b1=b1, w2=w2, b2=b2, w3=w3, b3=b3)


if __name__ == "__main__":
    # Small shapes consistent with the module:
    #   batch=8, num_nodes=4, nfeat=16  -> flattened features = 64
    #   out_channels=32
    B, NUM_NODES, NFEAT, OUT_CH = 8, 4, 16, 32

    key = jax.random.PRNGKey(0)
    kx, kp = jax.random.split(key)

    x = jax.random.normal(kx, (B, NUM_NODES, NFEAT), dtype=jnp.float32)
    params = init_params(kp, NUM_NODES, NFEAT, OUT_CH)

    # Pure-JAX reference.
    xf = x.reshape(B, -1)
    h1 = jnp.maximum(xf @ params["w1"] + params["b1"], 0.0)
    h2 = jnp.maximum(h1 @ params["w2"] + params["b2"], 0.0)
    y_ref = jnp.sum(h2 * params["w3"], axis=-1, keepdims=True) + params["b3"]

    # f32 path (exact semantics).
    y = loopresnet_forward(x, params)
    jax.block_until_ready(y)
    assert y.shape == (B, 1)
    assert jnp.allclose(y, y_ref, atol=1e-5, rtol=1e-5)

    # bf16 MXU-operand path (scaled-batch / v5e option): same kernel,
    # x stays f32 in HBM and is cast in-kernel; looser tolerance.
    y_bf16 = loopresnet_forward(x, params, compute_dtype=jnp.bfloat16)
    jax.block_until_ready(y_bf16)
    assert y_bf16.shape == (B, 1)
    assert bool(jnp.all(jnp.isfinite(y_bf16)))
    assert jnp.allclose(y_bf16, y_ref, atol=1e-1, rtol=1e-1)

    print("KERNEL_OK")
</pallas_src>

<mosaic_0001>
module attributes {stable_mosaic.version = 11 : i64} {
  func.func @_loopresnet_kernel(%arg0: i32, %arg1: memref<8x64xf32, #tpu.memory_space<vmem>>, %arg2: memref<64x64xf32, #tpu.memory_space<vmem>>, %arg3: memref<1x64xf32, #tpu.memory_space<vmem>>, %arg4: memref<64x32xf32, #tpu.memory_space<vmem>>, %arg5: memref<1x32xf32, #tpu.memory_space<vmem>>, %arg6: memref<1x32xf32, #tpu.memory_space<vmem>>, %arg7: memref<1xf32, #tpu.memory_space<smem>>, %arg8: memref<1x8xf32, #tpu.memory_space<vmem>>) attributes {dimension_semantics = [#tpu.dimension_semantics<parallel>], iteration_bounds = array<i64: 1>, scalar_prefetch = 0 : i64, scratch_operands = 0 : i64, tpu.core_type = #tpu.core_type<tc>, window_params = [{transform_indices = @transform_0, window_bounds = array<i64: 8, 64>}, {pipeline_mode = #tpu.pipeline_mode<synchronous>, transform_indices = @transform_1, window_bounds = array<i64: 64, 64>}, {pipeline_mode = #tpu.pipeline_mode<synchronous>, transform_indices = @transform_2, window_bounds = array<i64: 1, 64>}, {pipeline_mode = #tpu.pipeline_mode<synchronous>, transform_indices = @transform_3, window_bounds = array<i64: 64, 32>}, {pipeline_mode = #tpu.pipeline_mode<synchronous>, transform_indices = @transform_4, window_bounds = array<i64: 1, 32>}, {pipeline_mode = #tpu.pipeline_mode<synchronous>, transform_indices = @transform_5, window_bounds = array<i64: 1, 32>}, {transform_indices = @transform_6, window_bounds = array<i64: 1>}, {transform_indices = @transform_7, window_bounds = array<i64: 1, 8>}]} {
    %c0 = arith.constant 0 : index
    %c0_0 = arith.constant 0 : index
    %0 = vector.load %arg1[%c0, %c0_0] : memref<8x64xf32, #tpu.memory_space<vmem>>, vector<8x64xf32>
    %c0_1 = arith.constant 0 : index
    %c0_2 = arith.constant 0 : index
    %1 = vector.load %arg2[%c0_1, %c0_2] : memref<64x64xf32, #tpu.memory_space<vmem>>, vector<64x64xf32>
    %cst = arith.constant dense<0.000000e+00> : vector<8x64xf32>
    %2 = tpu.matmul %0, %1, %cst {dimension_numbers = #tpu.dot_dimension_numbers<[1], [0], [0], [1], [0, 0, 1, 1], [], []>} : vector<8x64xf32>, vector<64x64xf32>, vector<8x64xf32> -> vector<8x64xf32>
    %c0_3 = arith.constant 0 : index
    %c0_4 = arith.constant 0 : index
    %3 = vector.load %arg3[%c0_3, %c0_4] : memref<1x64xf32, #tpu.memory_space<vmem>>, vector<1x64xf32>
    %4 = vector.broadcast %3 : vector<1x64xf32> to vector<8x64xf32>
    %5 = arith.addf %2, %4 : vector<8x64xf32>
    %cst_5 = arith.constant 0.000000e+00 : f32
    %6 = vector.broadcast %cst_5 : f32 to vector<8x64xf32>
    %7 = arith.maximumf %5, %6 : vector<8x64xf32>
    %c0_6 = arith.constant 0 : index
    %c0_7 = arith.constant 0 : index
    %8 = vector.load %arg4[%c0_6, %c0_7] : memref<64x32xf32, #tpu.memory_space<vmem>>, vector<64x32xf32>
    %cst_8 = arith.constant dense<0.000000e+00> : vector<8x32xf32>
    %9 = tpu.matmul %7, %8, %cst_8 {dimension_numbers = #tpu.dot_dimension_numbers<[1], [0], [0], [1], [0, 0, 1, 1], [], []>} : vector<8x64xf32>, vector<64x32xf32>, vector<8x32xf32> -> vector<8x32xf32>
    %c0_9 = arith.constant 0 : index
    %c0_10 = arith.constant 0 : index
    %10 = vector.load %arg5[%c0_9, %c0_10] : memref<1x32xf32, #tpu.memory_space<vmem>>, vector<1x32xf32>
    %11 = vector.broadcast %10 : vector<1x32xf32> to vector<8x32xf32>
    %12 = arith.addf %9, %11 : vector<8x32xf32>
    %cst_11 = arith.constant 0.000000e+00 : f32
    %13 = vector.broadcast %cst_11 : f32 to vector<8x32xf32>
    %14 = arith.maximumf %12, %13 : vector<8x32xf32>
    %c0_12 = arith.constant 0 : index
    %c0_13 = arith.constant 0 : index
    %15 = vector.load %arg6[%c0_12, %c0_13] : memref<1x32xf32, #tpu.memory_space<vmem>>, vector<1x32xf32>
    %cst_14 = arith.constant dense<0.000000e+00> : vector<1x8xf32>
    %16 = tpu.matmul %15, %14, %cst_14 {dimension_numbers = #tpu.dot_dimension_numbers<[1], [1], [0], [0], [0, 0, 1, 0], [], []>} : vector<1x32xf32>, vector<8x32xf32>, vector<1x8xf32> -> vector<1x8xf32>
    %c0_15 = arith.constant 0 : index
    %17 = memref.load %arg7[%c0_15] : memref<1xf32, #tpu.memory_space<smem>>
    %18 = vector.broadcast %17 : f32 to vector<1x8xf32>
    %19 = arith.addf %16, %18 : vector<1x8xf32>
    %c0_16 = arith.constant 0 : index
    %c0_17 = arith.constant 0 : index
    %20 = vector.load %arg8[%c0_16, %c0_17] : memref<1x8xf32, #tpu.memory_space<vmem>>, vector<1x8xf32>
    tpu.vector_store %arg8[%c0_16, %c0_17], %19 {strides = array<i32>} : memref<1x8xf32, #tpu.memory_space<vmem>>, vector<1x8xf32>,
    return
  }
  func.func @transform_0(%arg0: i32) -> (i32, i32) {
    %c0_i32 = arith.constant 0 : i32
    %c0_i32_0 = arith.constant 0 : i32
    return %arg0, %c0_i32 : i32, i32
  }
  func.func @transform_1(%arg0: i32) -> (i32, i32) {
    %c0_i32 = arith.constant 0 : i32
    %c0_i32_0 = arith.constant 0 : i32
    %c0_i32_1 = arith.constant 0 : i32
    return %c0_i32, %c0_i32_0 : i32, i32
  }
  func.func @transform_2(%arg0: i32) -> (i32, i32) {
    %c0_i32 = arith.constant 0 : i32
    %c0_i32_0 = arith.constant 0 : i32
    %c0_i32_1 = arith.constant 0 : i32
    return %c0_i32, %c0_i32_0 : i32, i32
  }
  func.func @transform_3(%arg0: i32) -> (i32, i32) {
    %c0_i32 = arith.constant 0 : i32
    %c0_i32_0 = arith.constant 0 : i32
    %c0_i32_1 = arith.constant 0 : i32
    return %c0_i32, %c0_i32_0 : i32, i32
  }
  func.func @transform_4(%arg0: i32) -> (i32, i32) {
    %c0_i32 = arith.constant 0 : i32
    %c0_i32_0 = arith.constant 0 : i32
    %c0_i32_1 = arith.constant 0 : i32
    return %c0_i32, %c0_i32_0 : i32, i32
  }
  func.func @transform_5(%arg0: i32) -> (i32, i32) {
    %c0_i32 = arith.constant 0 : i32
    %c0_i32_0 = arith.constant 0 : i32
    %c0_i32_1 = arith.constant 0 : i32
    return %c0_i32, %c0_i32_0 : i32, i32
  }
  func.func @transform_6(%arg0: i32) -> i32 {
    %c0_i32 = arith.constant 0 : i32
    %c0_i32_0 = arith.constant 0 : i32
    return %c0_i32 : i32
  }
  func.func @transform_7(%arg0: i32) -> (i32, i32) {
    %c0_i32 = arith.constant 0 : i32
    %c0_i32_0 = arith.constant 0 : i32
    return %c0_i32, %arg0 : i32, i32
  }
}

</mosaic_0001>

<llo_original>
// kernel: loopresnet_forward.1
$region0: #{loopresnet_forward.1}
  #allocation0 [shape = 'u32[]', space=smem, size = 0x4, offset = 0x4, fixed_abs, tag = 'smem constant byte address 0x4 - core index']
  #allocation1 [shape = 'u32[144,128]{1,0:T(1,128)}', space=vmem, size = 0x12000, scoped, tag = 'internal scratch']
  #allocation2 [shape = 'f32[1]{0:T(128)S(6)}', space=smem, size = 0x200, scoped, tag = 'scoped memory for loopresnet_forward.1']
  %s0 = inlined_call_operand.vmem [shape: f32[8,64], index: 0, kind: input, shape index: {}]
  %s1 = inlined_call_operand.vmem [shape: f32[64,64], index: 1, kind: input, shape index: {}]
  %s2 = inlined_call_operand.vmem [shape: f32[1,64], index: 2, kind: input, shape index: {}]
  %s3 = inlined_call_operand.vmem [shape: f32[64,32], index: 3, kind: input, shape index: {}]
  %s4 = inlined_call_operand.vmem [shape: f32[1,32], index: 4, kind: input, shape index: {}]
  %s5 = inlined_call_operand.vmem [shape: f32[1,32], index: 5, kind: input, shape index: {}]
  %s6 = inlined_call_operand.<no memory space> [shape: f32[1], index: 6, kind: input, shape index: {}]
  %s7 = inlined_call_operand.hbm [shape: f32[1,8], index: 7, kind: output, shape index: {}]
  %s8 = sld [smem:[#allocation0]]
  $region38: #{loopresnet_forward.1} parent=0
    _
  %s10 = ssub.s32 1, %s8
  %s11 = scalar_select 0, %s10, %s8
  %12 = sst [smem:[#allocation2]] %s6
  $region1: #{loopresnet_forward.1} parent=0
    #allocation3 [shape = 'u8[512]{0}', space=vmem, size = 0x400, scoped, tag = 'output window, operand 0, single buffered']
    #allocation4 [shape = 's32[1]{0}', space=sflag, size = 0x4, scoped, tag = 'scoped memory for loopresnet_forward.1']
    %13 = vsyncpa [#allocation4], 0
    // Predicated region
    $region2: #{loopresnet_forward.1} parent=1 // pred_check
      _
    $region3: #{loopresnet_forward.1} parent=1 // pred_check_branch
      %15 = sbr.rel (0) target = $region5
    $region4: #{loopresnet_forward.1} parent=1 // pred_region
      _
    $region5: #{loopresnet_forward.1} parent=1 // pred_fallthru
      _
    // Predicated region
    $region6: #{loopresnet_forward.1} parent=1 // pred_check
      _
    $region7: #{loopresnet_forward.1} parent=1 // pred_check_branch
      %17 = sbr.rel (0) target = $region9
    $region8: #{loopresnet_forward.1} parent=1 // pred_region
      _
    $region9: #{loopresnet_forward.1} parent=1 // pred_fallthru
      _
    // Predicated region
    $region10: #{loopresnet_forward.1} parent=1 // pred_check
      _
    $region11: #{loopresnet_forward.1} parent=1 // pred_check_branch
      %19 = sbr.rel (0) target = $region13
    $region12: #{loopresnet_forward.1} parent=1 // pred_region
      _
    $region13: #{loopresnet_forward.1} parent=1 // pred_fallthru
      _
    // Predicated region
    $region14: #{loopresnet_forward.1} parent=1 // pred_check
      _
    $region15: #{loopresnet_forward.1} parent=1 // pred_check_branch
      %21 = sbr.rel (0) target = $region17
    $region16: #{loopresnet_forward.1} parent=1 // pred_region
      _
    $region17: #{loopresnet_forward.1} parent=1 // pred_fallthru
      _
    // Predicated region
    $region18: #{loopresnet_forward.1} parent=1 // pred_check
      _
    $region19: #{loopresnet_forward.1} parent=1 // pred_check_branch
      %23 = sbr.rel (0) target = $region21
    $region20: #{loopresnet_forward.1} parent=1 // pred_region
      _
    $region21: #{loopresnet_forward.1} parent=1 // pred_fallthru
      _
    // Predicated region
    $region22: #{loopresnet_forward.1} parent=1 // pred_check
      _
    $region23: #{loopresnet_forward.1} parent=1 // pred_check_branch
      %25 = sbr.rel (0) target = $region25
    $region24: #{loopresnet_forward.1} parent=1 // pred_region
      _
    $region25: #{loopresnet_forward.1} parent=1 // pred_fallthru
      _
    // Predicated region
    $region26: #{loopresnet_forward.1} parent=1 // pred_check
      _
    $region27: #{loopresnet_forward.1} parent=1 // pred_check_branch
      %27 = sbr.rel (0) target = $region29
    $region28: #{loopresnet_forward.1} parent=1 // pred_region
      _
    $region29: #{loopresnet_forward.1} parent=1 // pred_fallthru
      _
    %v28 = vld [vmem:[%s0] sm:$0xff]
    %v29 = vld [vmem:[%s1] sm:$0xff]
    %v30 = vld [vmem:[%s1 + $0x8] sm:$0xff]
    %v31 = vld [vmem:[%s1 + $0x10] sm:$0xff]
    %v32 = vld [vmem:[%s1 + $0x18] sm:$0xff]
    %v33 = vld [vmem:[%s1 + $0x20] sm:$0xff]
    %v34 = vld [vmem:[%s1 + $0x28] sm:$0xff]
    %v35 = vld [vmem:[%s1 + $0x30] sm:$0xff]
    %v36 = vld [vmem:[%s1 + $0x38] sm:$0xff]
    %v37 = vld [vmem:[%s2] sm:$0x1]
    %v39 = vlaneseq
    %v40 = vshrl.u32 %v39, 7
    %v41 = vsub.s32 0, %v40
    %v42 = vrot.slane %v37, %v41
    %vm44 = vcmask 523264
    %v46 = vsel %vm44, %v28, 0
    %48 = vmatprep.subr.mxu0 0.0
    %49 = vmatpush1.msra.mxu0 %v29
    %50 = vmatprep.subr.mxu0 0.0
    %51 = vmatpush1.msra.mxu0 %v30
    %52 = vmatprep.subr.mxu0 0.0
    %53 = vmatpush1.msra.mxu0 %v31
    %54 = vmatprep.subr.mxu0 0.0
    %55 = vmatpush1.msra.mxu0 %v32
    %56 = vmatprep.subr.mxu0 0.0
    %57 = vmatpush1.msra.mxu0 %v33
    %58 = vmatprep.subr.mxu0 0.0
    %59 = vmatpush1.msra.mxu0 %v34
    %60 = vmatprep.subr.mxu0 0.0
    %61 = vmatpush1.msra.mxu0 %v35
    %62 = vmatprep.subr.mxu0 0.0
    %63 = vmatpush1.msra.mxu0 %v36
    %64 = vmatprep.subr.mxu0 0.0
    %65 = vmatpush1.msra.mxu0 0.0
    %66 = vmatprep.subr.mxu0 0.0
    %67 = vmatpush1.msra.mxu0 0.0
    %68 = vmatprep.subr.mxu0 0.0
    %69 = vmatpush1.msra.mxu0 0.0
    %70 = vmatprep.subr.mxu0 0.0
    %71 = vmatpush1.msra.mxu0 0.0
    %72 = vmatprep.subr.mxu0 0.0
    %73 = vmatpush1.msra.mxu0 0.0
    %74 = vmatprep.subr.mxu0 0.0
    %75 = vmatpush1.msra.mxu0 0.0
    %76 = vmatprep.subr.mxu0 0.0
    %77 = vmatpush1.msra.mxu0 0.0
    %78 = vmatprep.subr.mxu0 0.0
    %79 = vmatpush1.msra.mxu0 0.0
    %80 = vmatprep.subr.mxu0 0.0
    %81 = vmatpush1.msra.mxu0 0.0
    %82 = vmatprep.subr.mxu0 0.0
    %83 = vmatpush1.msra.mxu0 0.0
    %84 = vmatprep.subr.mxu0 0.0
    %85 = vmatpush1.msra.mxu0 0.0
    %86 = vmatprep.subr.mxu0 0.0
    %87 = vmatpush1.msra.mxu0 0.0
    %88 = vmatprep.subr.mxu0 0.0
    %89 = vmatpush1.msra.mxu0 0.0
    %90 = vmatprep.subr.mxu0 0.0
    %91 = vmatpush1.msra.mxu0 0.0
    %92 = vmatprep.subr.mxu0 0.0
    %93 = vmatpush1.msra.mxu0 0.0
    %94 = vmatprep.subr.mxu0 0.0
    %95 = vmatpush1.msra.mxu0 0.0
    %96 = vmatprep.subr.mxu0 0.0
    %97 = vmatpush1.msra.mxu0 0.0
    %98 = vmatprep.subr.mxu0 0.0
    %99 = vmatpush1.msra.mxu0 0.0
    %100 = vmatprep.subr.mxu0 0.0
    %101 = vmatpush1.msra.mxu0 0.0
    %102 = vmatprep.subr.mxu0 0.0
    %103 = vmatpush1.msra.mxu0 0.0
    %104 = vmatprep.subr.mxu0 0.0
    %105 = vmatpush1.msra.mxu0 0.0
    %106 = vmatprep.subr.mxu0 0.0
    %107 = vmatpush1.msra.mxu0 0.0
    %108 = vmatprep.subr.mxu0 0.0
    %109 = vmatpush1.msra.mxu0 0.0
    %110 = vmatprep.subr.mxu0 0.0
    %111 = vmatpush1.msra.mxu0 0.0
    %112 = vmatprep.mubr.f32.mxu0 0.0
    %113 = vmatmul.mubr.f32.gmra.mrb[0].mxu0 %v46
    %v114 = vpop.f32.mrb[0].mxu0
    %v115 = vadd.f32 %v42, %v114
    %v116 = vpop.f32.mrb[0].mxu0
    %117 = vdwg.mxu0
    %v118 = vmax.f32 %v115, 0.0
    %v119 = vld [vmem:[%s3] sm:$0xff]
    %v120 = vld [vmem:[%s3 + $0x8] sm:$0xff]
    %v121 = vld [vmem:[%s3 + $0x10] sm:$0xff]
    %v122 = vld [vmem:[%s3 + $0x18] sm:$0xff]
    %v123 = vld [vmem:[%s3 + $0x20] sm:$0xff]
    %v124 = vld [vmem:[%s3 + $0x28] sm:$0xff]
    %v125 = vld [vmem:[%s3 + $0x30] sm:$0xff]
    %v126 = vld [vmem:[%s3 + $0x38] sm:$0xff]
    %v127 = vld [vmem:[%s4] sm:$0x1]
    %v129 = vlaneseq
    %v130 = vshrl.u32 %v129, 7
    %v131 = vsub.s32 0, %v130
    %v132 = vrot.slane %v127, %v131
    %v135 = vsel %vm44, %v118, 0
    %137 = vmatprep.subr.mxu0 0.0
    %138 = vmatpush1.msra.mxu0 %v119
    %139 = vmatprep.subr.mxu0 0.0
    %140 = vmatpush1.msra.mxu0 %v120
    %141 = vmatprep.subr.mxu0 0.0
    %142 = vmatpush1.msra.mxu0 %v121
    %143 = vmatprep.subr.mxu0 0.0
    %144 = vmatpush1.msra.mxu0 %v122
    %145 = vmatprep.subr.mxu0 0.0
    %146 = vmatpush1.msra.mxu0 %v123
    %147 = vmatprep.subr.mxu0 0.0
    %148 = vmatpush1.msra.mxu0 %v124
    %149 = vmatprep.subr.mxu0 0.0
    %150 = vmatpush1.msra.mxu0 %v125
    %151 = vmatprep.subr.mxu0 0.0
    %152 = vmatpush1.msra.mxu0 %v126
    %153 = vmatprep.subr.mxu0 0.0
    %154 = vmatpush1.msra.mxu0 0.0
    %155 = vmatprep.subr.mxu0 0.0
    %156 = vmatpush1.msra.mxu0 0.0
    %157 = vmatprep.subr.mxu0 0.0
    %158 = vmatpush1.msra.mxu0 0.0
    %159 = vmatprep.subr.mxu0 0.0
    %160 = vmatpush1.msra.mxu0 0.0
    %161 = vmatprep.subr.mxu0 0.0
    %162 = vmatpush1.msra.mxu0 0.0
    %163 = vmatprep.subr.mxu0 0.0
    %164 = vmatpush1.msra.mxu0 0.0
    %165 = vmatprep.subr.mxu0 0.0
    %166 = vmatpush1.msra.mxu0 0.0
    %167 = vmatprep.subr.mxu0 0.0
    %168 = vmatpush1.msra.mxu0 0.0
    %169 = vmatprep.subr.mxu0 0.0
    %170 = vmatpush1.msra.mxu0 0.0
    %171 = vmatprep.subr.mxu0 0.0
    %172 = vmatpush1.msra.mxu0 0.0
    %173 = vmatprep.subr.mxu0 0.0
    %174 = vmatpush1.msra.mxu0 0.0
    %175 = vmatprep.subr.mxu0 0.0
    %176 = vmatpush1.msra.mxu0 0.0
    %177 = vmatprep.subr.mxu0 0.0
    %178 = vmatpush1.msra.mxu0 0.0
    %179 = vmatprep.subr.mxu0 0.0
    %180 = vmatpush1.msra.mxu0 0.0
    %181 = vmatprep.subr.mxu0 0.0
    %182 = vmatpush1.msra.mxu0 0.0
    %183 = vmatprep.subr.mxu0 0.0
    %184 = vmatpush1.msra.mxu0 0.0
    %185 = vmatprep.subr.mxu0 0.0
    %186 = vmatpush1.msra.mxu0 0.0
    %187 = vmatprep.subr.mxu0 0.0
    %188 = vmatpush1.msra.mxu0 0.0
    %189 = vmatprep.subr.mxu0 0.0
    %190 = vmatpush1.msra.mxu0 0.0
    %191 = vmatprep.subr.mxu0 0.0
    %192 = vmatpush1.msra.mxu0 0.0
    %193 = vmatprep.subr.mxu0 0.0
    %194 = vmatpush1.msra.mxu0 0.0
    %195 = vmatprep.subr.mxu0 0.0
    %196 = vmatpush1.msra.mxu0 0.0
    %197 = vmatprep.subr.mxu0 0.0
    %198 = vmatpush1.msra.mxu0 0.0
    %199 = vmatprep.subr.mxu0 0.0
    %200 = vmatpush1.msra.mxu0 0.0
    %201 = vmatprep.mubr.f32.mxu0 0.0
    %202 = vmatmul.mubr.f32.gmra.mrb[0].mxu0 %v135
    %v203 = vpop.f32.mrb[0].mxu0
    %v204 = vadd.f32 %v132, %v203
    %v205 = vpop.f32.mrb[0].mxu0
    %206 = vdwg.mxu0
    %v207 = vmax.f32 %v204, 0.0
    %v208 = vld [vmem:[%s5] sm:$0x1]
    %s209 = sld [smem:[#allocation2]]
    %v210 = vstv %s209
    %vm211 = vcmask 261120
    %v213 = vsel %vm211, %v208, 0
    %v216 = vsel %vm211, %v207, 0
    %218 = vmatprep.subr.mxu0 0.0
    %219 = vmatpush1.xpose.msra.mxu0 %v216
    %220 = vmatprep.subr.mxu0 0.0
    %221 = vmatpush1.xpose.msra.mxu0 0.0
    %222 = vmatprep.subr.mxu0 0.0
    %223 = vmatpush1.xpose.msra.mxu0 0.0
    %224 = vmatprep.subr.mxu0 0.0
    %225 = vmatpush1.xpose.msra.mxu0 0.0
    %226 = vmatprep.subr.mxu0 0.0
    %227 = vmatpush1.xpose.msra.mxu0 0.0
    %228 = vmatprep.subr.mxu0 0.0
    %229 = vmatpush1.xpose.msra.mxu0 0.0
    %230 = vmatprep.subr.mxu0 0.0
    %231 = vmatpush1.xpose.msra.mxu0 0.0
    %232 = vmatprep.subr.mxu0 0.0
    %233 = vmatpush1.xpose.msra.mxu0 0.0
    %234 = vmatprep.subr.mxu0 0.0
    %235 = vmatpush1.xpose.msra.mxu0 0.0
    %236 = vmatprep.subr.mxu0 0.0
    %237 = vmatpush1.xpose.msra.mxu0 0.0
    %238 = vmatprep.subr.mxu0 0.0
    %239 = vmatpush1.xpose.msra.mxu0 0.0
    %240 = vmatprep.subr.mxu0 0.0
    %241 = vmatpush1.xpose.msra.mxu0 0.0
    %242 = vmatprep.subr.mxu0 0.0
    %243 = vmatpush1.xpose.msra.mxu0 0.0
    %244 = vmatprep.subr.mxu0 0.0
    %245 = vmatpush1.xpose.msra.mxu0 0.0
    %246 = vmatprep.subr.mxu0 0.0
    %247 = vmatpush1.xpose.msra.mxu0 0.0
    %248 = vmatprep.subr.mxu0 0.0
    %249 = vmatpush1.xpose.msra.mxu0 0.0
    %250 = vmatprep.subr.mxu0 0.0
    %251 = vmatpush1.xpose.msra.mxu0 0.0
    %252 = vmatprep.subr.mxu0 0.0
    %253 = vmatpush1.xpose.msra.mxu0 0.0
    %254 = vmatprep.subr.mxu0 0.0
    %255 = vmatpush1.xpose.msra.mxu0 0.0
    %256 = vmatprep.subr.mxu0 0.0
    %257 = vmatpush1.xpose.msra.mxu0 0.0
    %258 = vmatprep.subr.mxu0 0.0
    %259 = vmatpush1.xpose.msra.mxu0 0.0
    %260 = vmatprep.subr.mxu0 0.0
    %261 = vmatpush1.xpose.msra.mxu0 0.0
    %262 = vmatprep.subr.mxu0 0.0
    %263 = vmatpush1.xpose.msra.mxu0 0.0
    %264 = vmatprep.subr.mxu0 0.0
    %265 = vmatpush1.xpose.msra.mxu0 0.0
    %266 = vmatprep.subr.mxu0 0.0
    %267 = vmatpush1.xpose.msra.mxu0 0.0
    %268 = vmatprep.subr.mxu0 0.0
    %269 = vmatpush1.xpose.msra.mxu0 0.0
    %270 = vmatprep.subr.mxu0 0.0
    %271 = vmatpush1.xpose.msra.mxu0 0.0
    %272 = vmatprep.subr.mxu0 0.0
    %273 = vmatpush1.xpose.msra.mxu0 0.0
    %274 = vmatprep.subr.mxu0 0.0
    %275 = vmatpush1.xpose.msra.mxu0 0.0
    %276 = vmatprep.subr.mxu0 0.0
    %277 = vmatpush1.xpose.msra.mxu0 0.0
    %278 = vmatprep.subr.mxu0 0.0
    %279 = vmatpush1.xpose.msra.mxu0 0.0
    %280 = vmatprep.subr.mxu0 0.0
    %281 = vmatpush1.xpose.msra.mxu0 0.0
    %282 = vmatprep.mubr.f32.mxu0 0.0
    %283 = vmatmul.mubr.f32.gmra.mrb[0].mxu0 %v213
    %v284 = vpop.f32.mrb[0].mxu0
    %v285 = vadd.f32 %v210, %v284
    %v286 = vpop.f32.mrb[0].mxu0
    %287 = vdwg.mxu0
    %vm288 = vcmask 57344
    %289 = vst.msk [vmem:[#allocation3] sm:$0x1] %vm288, %v285
    // Predicated region
    $region30: #{loopresnet_forward.1} parent=1 // pred_check
      _
    $region31: #{loopresnet_forward.1} parent=1 // pred_check_branch
      %291 = sbr.rel (0) target = $region33
    $region32: #{loopresnet_forward.1} parent=1 // pred_region
      %s293 = ssub.s32 16, 16
      %294 = vsyncadd [#allocation4], %s293
      %s296 = sshll.u32 [#allocation3], 4
      %s297 = int_to_ptr.vmem [resolvable:$true] %s296
      %299 = dma.vmem_to_hbm [thread:$0]  %s297, 16, %s7, [#allocation4]
    $region33: #{loopresnet_forward.1} parent=1 // pred_fallthru
      _
    // Predicated region
    $region34: #{loopresnet_forward.1} parent=1 // pred_check
      _
    $region35: #{loopresnet_forward.1} parent=1 // pred_check_branch
      %301 = sbr.rel (0) target = $region37
    $region36: #{loopresnet_forward.1} parent=1 // pred_region
      %302 = dma.done [#allocation4], 16
    $region37: #{loopresnet_forward.1} parent=1 // pred_fallthru
      _
    %303 = vsyncpa [#allocation4], 1

</llo_original>
